<compile_context>
chip_gen: v7x
topology: tpu7x:2x2x1
jax: 0.10.0
libtpu: 0.0.40
codegen_flags: <defaults>
</compile_context>

<pallas_src>
import functools

import jax
import jax.numpy as jnp
from jax import lax
from jax.experimental import pallas as pl
from jax.experimental.pallas import tpu as pltpu

_EPS = 1e-5


def _round_up(x, m):
    return ((x + m - 1) // m) * m


def _pad2(a, rows, cols):
    pr, pc = rows - a.shape[0], cols - a.shape[1]
    if pr == 0 and pc == 0:
        return a
    return jnp.pad(a, ((0, pr), (0, pc)))


def _make_block_kernel(n_rows, f_rows, matmul_dtype):
    """n_rows / f_rows are the TRUE (unpadded) BatchNorm batch sizes."""

    def kernel(x_ref, v_ref, e_ref,
               mw_ref, mb_ref, mg_ref,
               rw_ref, rb_ref, rg_ref,
               uw_ref, ub_ref, ug_ref,
               z_ref, enew_ref):
        f32 = jnp.float32
        lp = lambda a: a.astype(matmul_dtype)     # MXU operand precision only

        x = x_ref[...].astype(f32)                # (Np, Fp)
        v = v_ref[...].astype(f32)                # (Np, nfp)
        e = e_ref[...].astype(f32)                # (Np, nfp)

        def mm_nt(a_low, b_low):
            # a @ b.T without materializing the transpose: contract dim 1 of
            # both operands; low-precision operands, f32 accumulation.
            return lax.dot_general(a_low, b_low, (((1,), (1,)), ((), ())),
                                   preferred_element_type=f32)

        def bn_scaled(t, gamma, count):
            # Training-mode BatchNorm1d stats over axis 0 using the TRUE row
            # count (padded rows are all-zero, so they drop out of the sums).
            # gamma is folded into the rsqrt scale; beta was folded into the
            # following Linear's bias in the wrapper.
            inv = 1.0 / count
            mean = jnp.sum(t, axis=0, keepdims=True) * inv
            var = jnp.sum(t * t, axis=0, keepdims=True) * inv - mean * mean
            scale = gamma * lax.rsqrt(jnp.maximum(var, 0.0) + _EPS)
            return (t - mean) * scale

        # ---- D = M(M_norm(input^T @ (view - E))) ------------------ (Fp, nfp)
        # The batch-axis contraction needs a transposed LHS; transpose the
        # small (Np, Fp) operand explicitly (same XLU cost as Mosaic's own
        # canonicalization of a transposed-LHS matmul).
        vme = v - e
        t = jnp.dot(lp(x.T), lp(vme), preferred_element_type=f32)
        t_s = bn_scaled(t, mg_ref[...], f_rows)
        d = mm_nt(lp(t_s), lp(mw_ref[...])) + mb_ref[...]
        d_low = lp(d)                              # cast once, used twice

        # ---- E_new = view - input @ D ----------------------------- (Np, nfp)
        xd = jnp.dot(lp(x), d_low, preferred_element_type=f32)
        enew_ref[...] = (v - xd).astype(enew_ref.dtype)

        # ---- Z = R(R_norm(input)) + U(U_norm((view - E_new) @ D^T)) (Np, Fp)
        # view - E_new == input @ D == xd exactly; reuse it.
        s = mm_nt(lp(xd), d_low)
        u_out = mm_nt(lp(bn_scaled(s, ug_ref[...], n_rows)),
                      lp(uw_ref[...])) + ub_ref[...]
        r_out = mm_nt(lp(bn_scaled(x, rg_ref[...], n_rows)),
                      lp(rw_ref[...])) + rb_ref[...]
        z_ref[...] = (r_out + u_out).astype(z_ref.dtype)

    return kernel


@functools.partial(jax.jit, static_argnames=("matmul_dtype",))
def block_forward(x, view, E, params, *, matmul_dtype=jnp.bfloat16):
    """Block forward as a single Pallas kernel.  Returns (Z, E_new)."""
    N, F = x.shape
    _, nfea = view.shape
    Np, Fp, nfp = _round_up(N, 8), _round_up(F, 128), _round_up(nfea, 128)

    # Lane-dense zero padding (inert: see kernel notes above).
    xp = _pad2(x, Np, Fp)
    vp = _pad2(view, Np, nfp)
    ep = _pad2(E, Np, nfp)
    mw = _pad2(params["M_w"], nfp, nfp)
    rw = _pad2(params["R_w"], Fp, Fp)
    uw = _pad2(params["U_w"], Fp, Fp)
    mg = _pad2(params["M_gamma"], 1, nfp)
    rg = _pad2(params["R_gamma"], 1, Fp)
    ug = _pad2(params["U_gamma"], 1, Fp)

    # Fold BatchNorm beta into the Linear bias:
    #   BN(t) @ W^T + b == ((t - mean)*gamma*rsqrt) @ W^T + (beta @ W^T + b)
    # Parameter-only O(d^2) precompute on tiny vectors.
    mb = _pad2(params["M_beta"] @ params["M_w"].T + params["M_b"], 1, nfp)
    rb = _pad2(params["R_beta"] @ params["R_w"].T + params["R_b"], 1, Fp)
    ub = _pad2(params["U_beta"] @ params["U_w"].T + params["U_b"], 1, Fp)

    kernel = _make_block_kernel(N, F, matmul_dtype)
    vmem = lambda: pl.BlockSpec(memory_space=pltpu.MemorySpace.VMEM)

    z_p, e_p = pl.pallas_call(
        kernel,
        in_specs=[vmem() for _ in range(12)],
        out_specs=(vmem(), vmem()),
        out_shape=(jax.ShapeDtypeStruct((Np, Fp), x.dtype),
                   jax.ShapeDtypeStruct((Np, nfp), view.dtype)),
    )(xp, vp, ep, mw, mb, mg, rw, rb, rg, uw, ub, ug)

    return z_p[:N, :F], e_p[:N, :nfea]


def init_params(key, out_features, nfea):
    """Deterministic synthetic init (PyTorch-like scales; BN gamma=1, beta=0)."""
    ks = jax.random.split(key, 6)
    f32 = jnp.float32
    lim_f = 1.0 / jnp.sqrt(out_features)
    lim_m = 1.0 / jnp.sqrt(nfea)
    return {
        # M: Linear(nfea, nfea); biases stored as (1, d)
        "M_w": jax.random.uniform(ks[0], (nfea, nfea), f32, -lim_m, lim_m),
        "M_b": jax.random.uniform(ks[1], (1, nfea), f32, -lim_m, lim_m),
        "M_gamma": jnp.ones((1, nfea), f32),
        "M_beta": jnp.zeros((1, nfea), f32),
        # R: Linear(F, F)
        "R_w": jax.random.uniform(ks[2], (out_features, out_features), f32, -lim_f, lim_f),
        "R_b": jax.random.uniform(ks[3], (1, out_features), f32, -lim_f, lim_f),
        "R_gamma": jnp.ones((1, out_features), f32),
        "R_beta": jnp.zeros((1, out_features), f32),
        # U: Linear(F, F)
        "U_w": jax.random.uniform(ks[4], (out_features, out_features), f32, -lim_f, lim_f),
        "U_b": jax.random.uniform(ks[5], (1, out_features), f32, -lim_f, lim_f),
        "U_gamma": jnp.ones((1, out_features), f32),
        "U_beta": jnp.zeros((1, out_features), f32),
    }


def _reference(x, view, E, p):
    """Pure-JAX f32 mirror of the PyTorch forward (training-mode BN)."""
    def bn(t, g, b):
        m = jnp.mean(t, axis=0, keepdims=True)
        v = jnp.mean((t - m) ** 2, axis=0, keepdims=True)
        return (t - m) / jnp.sqrt(v + _EPS) * g + b

    D = bn(x.T @ (view - E), p["M_gamma"], p["M_beta"]) @ p["M_w"].T + p["M_b"]
    E_new = view - x @ D
    Z = (bn(x, p["R_gamma"], p["R_beta"]) @ p["R_w"].T + p["R_b"]) + \
        (bn((view - E_new) @ D.T, p["U_gamma"], p["U_beta"]) @ p["U_w"].T + p["U_b"])
    return Z, E_new


if __name__ == "__main__":
    # NOTE: these synthetic shapes are launch/DMA-overhead dominated (the
    # contraction dims are 8-32, <1% MXU utilization); they validate
    # correctness only.  Benchmark at multiple-of-128 feature dims.
    N, out_features, nfea = 8, 16, 32

    key = jax.random.PRNGKey(0)
    k_x, k_v, k_e, k_p = jax.random.split(key, 4)
    x = jax.random.normal(k_x, (N, out_features), jnp.float32)
    view = jax.random.normal(k_v, (N, nfea), jnp.float32)
    E = jax.random.normal(k_e, (N, nfea), jnp.float32)
    params = init_params(k_p, out_features, nfea)

    Z_ref, E_ref = _reference(x, view, E, params)

    # 1) f32-MXU path: tight check of the forward semantics.
    Z32, E32 = block_forward(x, view, E, params, matmul_dtype=jnp.float32)
    jax.block_until_ready((Z32, E32))
    assert jnp.allclose(Z32, Z_ref, atol=2e-3, rtol=2e-3), "Z mismatch (f32 path)"
    assert jnp.allclose(E32, E_ref, atol=2e-3, rtol=2e-3), "E mismatch (f32 path)"

    # 2) Default bf16-MXU / f32-accumulate path (the perf-tuned config).
    #    Loose tolerance: bf16 operand rounding compounds through the chained
    #    matmuls; exact semantics are already proven by the f32 run above.
    Zbf, Ebf = block_forward(x, view, E, params, matmul_dtype=jnp.bfloat16)
    jax.block_until_ready((Zbf, Ebf))
    assert jnp.allclose(Zbf, Z_ref, atol=1e-1, rtol=1e-1), "Z mismatch (bf16 path)"
    assert jnp.allclose(Ebf, E_ref, atol=1e-1, rtol=1e-1), "E mismatch (bf16 path)"

    print("KERNEL_OK")
</pallas_src>

<mosaic_0001>
module attributes {stable_mosaic.version = 11 : i64} {
  func.func @kernel(%arg0: memref<8x128xf32, #tpu.memory_space<vmem>>, %arg1: memref<8x128xf32, #tpu.memory_space<vmem>>, %arg2: memref<8x128xf32, #tpu.memory_space<vmem>>, %arg3: memref<128x128xf32, #tpu.memory_space<vmem>>, %arg4: memref<1x128xf32, #tpu.memory_space<vmem>>, %arg5: memref<1x128xf32, #tpu.memory_space<vmem>>, %arg6: memref<128x128xf32, #tpu.memory_space<vmem>>, %arg7: memref<1x128xf32, #tpu.memory_space<vmem>>, %arg8: memref<1x128xf32, #tpu.memory_space<vmem>>, %arg9: memref<128x128xf32, #tpu.memory_space<vmem>>, %arg10: memref<1x128xf32, #tpu.memory_space<vmem>>, %arg11: memref<1x128xf32, #tpu.memory_space<vmem>>, %arg12: memref<8x128xf32, #tpu.memory_space<vmem>>, %arg13: memref<8x128xf32, #tpu.memory_space<vmem>>) attributes {dimension_semantics = [], scalar_prefetch = 0 : i64, scratch_operands = 0 : i64, tpu.core_type = #tpu.core_type<tc>} {
    %c0 = arith.constant 0 : index
    %c0_0 = arith.constant 0 : index
    %0 = vector.load %arg0[%c0, %c0_0] : memref<8x128xf32, #tpu.memory_space<vmem>>, vector<8x128xf32>
    %c0_1 = arith.constant 0 : index
    %c0_2 = arith.constant 0 : index
    %1 = vector.load %arg1[%c0_1, %c0_2] : memref<8x128xf32, #tpu.memory_space<vmem>>, vector<8x128xf32>
    %c0_3 = arith.constant 0 : index
    %c0_4 = arith.constant 0 : index
    %2 = vector.load %arg2[%c0_3, %c0_4] : memref<8x128xf32, #tpu.memory_space<vmem>>, vector<8x128xf32>
    %3 = arith.subf %1, %2 : vector<8x128xf32>
    %4 = tpu.transpose %0, [1, 0] : vector<8x128xf32> -> vector<128x8xf32>
    %cst = arith.constant dense<0.000000e+00> : vector<128x128xf32>
    %5 = tpu.matmul %4, %3, %cst {dimension_numbers = #tpu.dot_dimension_numbers<[1], [0], [0], [1], [0, 0, 1, 1], [], []>} : vector<128x8xf32>, vector<8x128xf32>, vector<128x128xf32> -> vector<128x128xf32>
    %c0_5 = arith.constant 0 : index
    %c0_6 = arith.constant 0 : index
    %6 = vector.load %arg5[%c0_5, %c0_6] : memref<1x128xf32, #tpu.memory_space<vmem>>, vector<1x128xf32>
    %cst_7 = arith.constant dense<0.000000e+00> : vector<128xf32>
    %7 = vector.multi_reduction <add>, %5, %cst_7 [0] : vector<128x128xf32> to vector<128xf32>
    %8 = vector.shape_cast %7 : vector<128xf32> to vector<1x128xf32>
    %cst_8 = arith.constant 6.250000e-02 : f32
    %9 = vector.broadcast %cst_8 : f32 to vector<1x128xf32>
    %10 = arith.mulf %8, %9 : vector<1x128xf32>
    %11 = arith.mulf %5, %5 : vector<128x128xf32>
    %cst_9 = arith.constant dense<0.000000e+00> : vector<128xf32>
    %12 = vector.multi_reduction <add>, %11, %cst_9 [0] : vector<128x128xf32> to vector<128xf32>
    %13 = vector.shape_cast %12 : vector<128xf32> to vector<1x128xf32>
    %cst_10 = arith.constant 6.250000e-02 : f32
    %14 = vector.broadcast %cst_10 : f32 to vector<1x128xf32>
    %15 = arith.mulf %13, %14 : vector<1x128xf32>
    %16 = arith.mulf %10, %10 : vector<1x128xf32>
    %17 = arith.subf %15, %16 : vector<1x128xf32>
    %cst_11 = arith.constant 0.000000e+00 : f32
    %18 = vector.broadcast %cst_11 : f32 to vector<1x128xf32>
    %19 = arith.maximumf %17, %18 : vector<1x128xf32>
    %cst_12 = arith.constant 9.99999974E-6 : f32
    %20 = vector.broadcast %cst_12 : f32 to vector<1x128xf32>
    %21 = arith.addf %19, %20 : vector<1x128xf32>
    %22 = math.rsqrt %21 : vector<1x128xf32>
    %23 = arith.mulf %6, %22 : vector<1x128xf32>
    %24 = vector.broadcast %10 : vector<1x128xf32> to vector<128x128xf32>
    %25 = arith.subf %5, %24 : vector<128x128xf32>
    %26 = vector.broadcast %23 : vector<1x128xf32> to vector<128x128xf32>
    %27 = arith.mulf %25, %26 : vector<128x128xf32>
    %c0_13 = arith.constant 0 : index
    %c0_14 = arith.constant 0 : index
    %28 = vector.load %arg3[%c0_13, %c0_14] : memref<128x128xf32, #tpu.memory_space<vmem>>, vector<128x128xf32>
    %cst_15 = arith.constant dense<0.000000e+00> : vector<128x128xf32>
    %29 = tpu.matmul %27, %28, %cst_15 {dimension_numbers = #tpu.dot_dimension_numbers<[1], [1], [0], [0], [0, 0, 1, 0], [], []>} : vector<128x128xf32>, vector<128x128xf32>, vector<128x128xf32> -> vector<128x128xf32>
    %c0_16 = arith.constant 0 : index
    %c0_17 = arith.constant 0 : index
    %30 = vector.load %arg4[%c0_16, %c0_17] : memref<1x128xf32, #tpu.memory_space<vmem>>, vector<1x128xf32>
    %31 = vector.broadcast %30 : vector<1x128xf32> to vector<128x128xf32>
    %32 = arith.addf %29, %31 : vector<128x128xf32>
    %cst_18 = arith.constant dense<0.000000e+00> : vector<8x128xf32>
    %33 = tpu.matmul %0, %32, %cst_18 {dimension_numbers = #tpu.dot_dimension_numbers<[1], [0], [0], [1], [0, 0, 1, 1], [], []>} : vector<8x128xf32>, vector<128x128xf32>, vector<8x128xf32> -> vector<8x128xf32>
    %34 = arith.subf %1, %33 : vector<8x128xf32>
    %c0_19 = arith.constant 0 : index
    %c0_20 = arith.constant 0 : index
    %35 = vector.load %arg13[%c0_19, %c0_20] : memref<8x128xf32, #tpu.memory_space<vmem>>, vector<8x128xf32>
    tpu.vector_store %arg13[%c0_19, %c0_20], %34 {strides = array<i32>} : memref<8x128xf32, #tpu.memory_space<vmem>>, vector<8x128xf32>,
    %cst_21 = arith.constant dense<0.000000e+00> : vector<8x128xf32>
    %36 = tpu.matmul %33, %32, %cst_21 {dimension_numbers = #tpu.dot_dimension_numbers<[1], [1], [0], [0], [0, 0, 1, 0], [], []>} : vector<8x128xf32>, vector<128x128xf32>, vector<8x128xf32> -> vector<8x128xf32>
    %c0_22 = arith.constant 0 : index
    %c0_23 = arith.constant 0 : index
    %37 = vector.load %arg11[%c0_22, %c0_23] : memref<1x128xf32, #tpu.memory_space<vmem>>, vector<1x128xf32>
    %cst_24 = arith.constant dense<0.000000e+00> : vector<128xf32>
    %38 = vector.multi_reduction <add>, %36, %cst_24 [0] : vector<8x128xf32> to vector<128xf32>
    %39 = vector.shape_cast %38 : vector<128xf32> to vector<1x128xf32>
    %cst_25 = arith.constant 1.250000e-01 : f32
    %40 = vector.broadcast %cst_25 : f32 to vector<1x128xf32>
    %41 = arith.mulf %39, %40 : vector<1x128xf32>
    %42 = arith.mulf %36, %36 : vector<8x128xf32>
    %cst_26 = arith.constant dense<0.000000e+00> : vector<128xf32>
    %43 = vector.multi_reduction <add>, %42, %cst_26 [0] : vector<8x128xf32> to vector<128xf32>
    %44 = vector.shape_cast %43 : vector<128xf32> to vector<1x128xf32>
    %cst_27 = arith.constant 1.250000e-01 : f32
    %45 = vector.broadcast %cst_27 : f32 to vector<1x128xf32>
    %46 = arith.mulf %44, %45 : vector<1x128xf32>
    %47 = arith.mulf %41, %41 : vector<1x128xf32>
    %48 = arith.subf %46, %47 : vector<1x128xf32>
    %cst_28 = arith.constant 0.000000e+00 : f32
    %49 = vector.broadcast %cst_28 : f32 to vector<1x128xf32>
    %50 = arith.maximumf %48, %49 : vector<1x128xf32>
    %cst_29 = arith.constant 9.99999974E-6 : f32
    %51 = vector.broadcast %cst_29 : f32 to vector<1x128xf32>
    %52 = arith.addf %50, %51 : vector<1x128xf32>
    %53 = math.rsqrt %52 : vector<1x128xf32>
    %54 = arith.mulf %37, %53 : vector<1x128xf32>
    %55 = vector.broadcast %41 : vector<1x128xf32> to vector<8x128xf32>
    %56 = arith.subf %36, %55 : vector<8x128xf32>
    %57 = vector.broadcast %54 : vector<1x128xf32> to vector<8x128xf32>
    %58 = arith.mulf %56, %57 : vector<8x128xf32>
    %c0_30 = arith.constant 0 : index
    %c0_31 = arith.constant 0 : index
    %59 = vector.load %arg9[%c0_30, %c0_31] : memref<128x128xf32, #tpu.memory_space<vmem>>, vector<128x128xf32>
    %cst_32 = arith.constant dense<0.000000e+00> : vector<8x128xf32>
    %60 = tpu.matmul %58, %59, %cst_32 {dimension_numbers = #tpu.dot_dimension_numbers<[1], [1], [0], [0], [0, 0, 1, 0], [], []>} : vector<8x128xf32>, vector<128x128xf32>, vector<8x128xf32> -> vector<8x128xf32>
    %c0_33 = arith.constant 0 : index
    %c0_34 = arith.constant 0 : index
    %61 = vector.load %arg10[%c0_33, %c0_34] : memref<1x128xf32, #tpu.memory_space<vmem>>, vector<1x128xf32>
    %62 = vector.broadcast %61 : vector<1x128xf32> to vector<8x128xf32>
    %63 = arith.addf %60, %62 : vector<8x128xf32>
    %c0_35 = arith.constant 0 : index
    %c0_36 = arith.constant 0 : index
    %64 = vector.load %arg8[%c0_35, %c0_36] : memref<1x128xf32, #tpu.memory_space<vmem>>, vector<1x128xf32>
    %cst_37 = arith.constant dense<0.000000e+00> : vector<128xf32>
    %65 = vector.multi_reduction <add>, %0, %cst_37 [0] : vector<8x128xf32> to vector<128xf32>
    %66 = vector.shape_cast %65 : vector<128xf32> to vector<1x128xf32>
    %cst_38 = arith.constant 1.250000e-01 : f32
    %67 = vector.broadcast %cst_38 : f32 to vector<1x128xf32>
    %68 = arith.mulf %66, %67 : vector<1x128xf32>
    %69 = arith.mulf %0, %0 : vector<8x128xf32>
    %cst_39 = arith.constant dense<0.000000e+00> : vector<128xf32>
    %70 = vector.multi_reduction <add>, %69, %cst_39 [0] : vector<8x128xf32> to vector<128xf32>
    %71 = vector.shape_cast %70 : vector<128xf32> to vector<1x128xf32>
    %cst_40 = arith.constant 1.250000e-01 : f32
    %72 = vector.broadcast %cst_40 : f32 to vector<1x128xf32>
    %73 = arith.mulf %71, %72 : vector<1x128xf32>
    %74 = arith.mulf %68, %68 : vector<1x128xf32>
    %75 = arith.subf %73, %74 : vector<1x128xf32>
    %cst_41 = arith.constant 0.000000e+00 : f32
    %76 = vector.broadcast %cst_41 : f32 to vector<1x128xf32>
    %77 = arith.maximumf %75, %76 : vector<1x128xf32>
    %cst_42 = arith.constant 9.99999974E-6 : f32
    %78 = vector.broadcast %cst_42 : f32 to vector<1x128xf32>
    %79 = arith.addf %77, %78 : vector<1x128xf32>
    %80 = math.rsqrt %79 : vector<1x128xf32>
    %81 = arith.mulf %64, %80 : vector<1x128xf32>
    %82 = vector.broadcast %68 : vector<1x128xf32> to vector<8x128xf32>
    %83 = arith.subf %0, %82 : vector<8x128xf32>
    %84 = vector.broadcast %81 : vector<1x128xf32> to vector<8x128xf32>
    %85 = arith.mulf %83, %84 : vector<8x128xf32>
    %c0_43 = arith.constant 0 : index
    %c0_44 = arith.constant 0 : index
    %86 = vector.load %arg6[%c0_43, %c0_44] : memref<128x128xf32, #tpu.memory_space<vmem>>, vector<128x128xf32>
    %cst_45 = arith.constant dense<0.000000e+00> : vector<8x128xf32>
    %87 = tpu.matmul %85, %86, %cst_45 {dimension_numbers = #tpu.dot_dimension_numbers<[1], [1], [0], [0], [0, 0, 1, 0], [], []>} : vector<8x128xf32>, vector<128x128xf32>, vector<8x128xf32> -> vector<8x128xf32>
    %c0_46 = arith.constant 0 : index
    %c0_47 = arith.constant 0 : index
    %88 = vector.load %arg7[%c0_46, %c0_47] : memref<1x128xf32, #tpu.memory_space<vmem>>, vector<1x128xf32>
    %89 = vector.broadcast %88 : vector<1x128xf32> to vector<8x128xf32>
    %90 = arith.addf %87, %89 : vector<8x128xf32>
    %91 = arith.addf %90, %63 : vector<8x128xf32>
    %c0_48 = arith.constant 0 : index
    %c0_49 = arith.constant 0 : index
    %92 = vector.load %arg12[%c0_48, %c0_49] : memref<8x128xf32, #tpu.memory_space<vmem>>, vector<8x128xf32>
    tpu.vector_store %arg12[%c0_48, %c0_49], %91 {strides = array<i32>} : memref<8x128xf32, #tpu.memory_space<vmem>>, vector<8x128xf32>,
    return
  }
}

</mosaic_0001>

<llo_original>
// kernel: block_forward.1
$region0: #{block_forward.1}
  #allocation0 [shape = 'u32[]', space=smem, size = 0x4, offset = 0x4, fixed_abs, tag = 'smem constant byte address 0x4 - core index']
  #allocation1 [shape = 'u32[144,128]{1,0:T(1,128)}', space=vmem, size = 0x12000, scoped, tag = 'internal scratch']
  %s0 = inlined_call_operand.vmem [shape: f32[8,128], index: 0, kind: input, shape index: {}]
  %s1 = inlined_call_operand.vmem [shape: f32[8,128], index: 1, kind: input, shape index: {}]
  %s2 = inlined_call_operand.vmem [shape: f32[8,128], index: 2, kind: input, shape index: {}]
  %s3 = inlined_call_operand.vmem [shape: f32[128,128], index: 3, kind: input, shape index: {}]
  %s4 = inlined_call_operand.vmem [shape: f32[1,128], index: 4, kind: input, shape index: {}]
  %s5 = inlined_call_operand.vmem [shape: f32[1,128], index: 5, kind: input, shape index: {}]
  %s6 = inlined_call_operand.vmem [shape: f32[128,128], index: 6, kind: input, shape index: {}]
  %s7 = inlined_call_operand.vmem [shape: f32[1,128], index: 7, kind: input, shape index: {}]
  %s8 = inlined_call_operand.vmem [shape: f32[1,128], index: 8, kind: input, shape index: {}]
  %s9 = inlined_call_operand.vmem [shape: f32[128,128], index: 9, kind: input, shape index: {}]
  %s10 = inlined_call_operand.vmem [shape: f32[1,128], index: 10, kind: input, shape index: {}]
  %s11 = inlined_call_operand.vmem [shape: f32[1,128], index: 11, kind: input, shape index: {}]
  %s12 = inlined_call_operand.hbm [shape: f32[8,128], index: 12, kind: output, shape index: {0}]
  %s13 = inlined_call_operand.hbm [shape: f32[8,128], index: 13, kind: output, shape index: {1}]
  %14 = xla_tuple %s12, %s13
  %s15 = sld [smem:[#allocation0]]
  $region66: #{block_forward.1} parent=0
    _
  %s17 = ssub.s32 1, %s15
  %s18 = scalar_select 0, %s17, %s15
  $region1: #{block_forward.1} parent=0
    #allocation2 [shape = 'u8[4096]{0}', space=vmem, size = 0x1000, scoped, tag = 'output window, operand 0, single buffered']
    #allocation3 [shape = 's32[1]{0}', space=sflag, size = 0x4, scoped, tag = 'scoped memory for block_forward.1']
    #allocation4 [shape = 'u8[4096]{0}', space=vmem, size = 0x1000, scoped, tag = 'output window, operand 1, single buffered']
    #allocation5 [shape = 's32[1]{0}', space=sflag, size = 0x4, scoped, tag = 'scoped memory for block_forward.1']
    %19 = vsyncpa [#allocation3], 0
    %20 = vsyncpa [#allocation5], 0
    // Predicated region
    $region2: #{block_forward.1} parent=1 // pred_check
      _
    $region3: #{block_forward.1} parent=1 // pred_check_branch
      %22 = sbr.rel (0) target = $region5
    $region4: #{block_forward.1} parent=1 // pred_region
      _
    $region5: #{block_forward.1} parent=1 // pred_fallthru
      _
    // Predicated region
    $region6: #{block_forward.1} parent=1 // pred_check
      _
    $region7: #{block_forward.1} parent=1 // pred_check_branch
      %24 = sbr.rel (0) target = $region9
    $region8: #{block_forward.1} parent=1 // pred_region
      _
    $region9: #{block_forward.1} parent=1 // pred_fallthru
      _
    // Predicated region
    $region10: #{block_forward.1} parent=1 // pred_check
      _
    $region11: #{block_forward.1} parent=1 // pred_check_branch
      %26 = sbr.rel (0) target = $region13
    $region12: #{block_forward.1} parent=1 // pred_region
      _
    $region13: #{block_forward.1} parent=1 // pred_fallthru
      _
    // Predicated region
    $region14: #{block_forward.1} parent=1 // pred_check
      _
    $region15: #{block_forward.1} parent=1 // pred_check_branch
      %28 = sbr.rel (0) target = $region17
    $region16: #{block_forward.1} parent=1 // pred_region
      _
    $region17: #{block_forward.1} parent=1 // pred_fallthru
      _
    // Predicated region
    $region18: #{block_forward.1} parent=1 // pred_check
      _
    $region19: #{block_forward.1} parent=1 // pred_check_branch
      %30 = sbr.rel (0) target = $region21
    $region20: #{block_forward.1} parent=1 // pred_region
      _
    $region21: #{block_forward.1} parent=1 // pred_fallthru
      _
    // Predicated region
    $region22: #{block_forward.1} parent=1 // pred_check
      _
    $region23: #{block_forward.1} parent=1 // pred_check_branch
      %32 = sbr.rel (0) target = $region25
    $region24: #{block_forward.1} parent=1 // pred_region
      _
    $region25: #{block_forward.1} parent=1 // pred_fallthru
      _
    // Predicated region
    $region26: #{block_forward.1} parent=1 // pred_check
      _
    $region27: #{block_forward.1} parent=1 // pred_check_branch
      %34 = sbr.rel (0) target = $region29
    $region28: #{block_forward.1} parent=1 // pred_region
      _
    $region29: #{block_forward.1} parent=1 // pred_fallthru
      _
    // Predicated region
    $region30: #{block_forward.1} parent=1 // pred_check
      _
    $region31: #{block_forward.1} parent=1 // pred_check_branch
      %36 = sbr.rel (0) target = $region33
    $region32: #{block_forward.1} parent=1 // pred_region
      _
    $region33: #{block_forward.1} parent=1 // pred_fallthru
      _
    // Predicated region
    $region34: #{block_forward.1} parent=1 // pred_check
      _
    $region35: #{block_forward.1} parent=1 // pred_check_branch
      %38 = sbr.rel (0) target = $region37
    $region36: #{block_forward.1} parent=1 // pred_region
      _
    $region37: #{block_forward.1} parent=1 // pred_fallthru
      _
    // Predicated region
    $region38: #{block_forward.1} parent=1 // pred_check
      _
    $region39: #{block_forward.1} parent=1 // pred_check_branch
      %40 = sbr.rel (0) target = $region41
    $region40: #{block_forward.1} parent=1 // pred_region
      _
    $region41: #{block_forward.1} parent=1 // pred_fallthru
      _
    // Predicated region
    $region42: #{block_forward.1} parent=1 // pred_check
      _
    $region43: #{block_forward.1} parent=1 // pred_check_branch
      %42 = sbr.rel (0) target = $region45
    $region44: #{block_forward.1} parent=1 // pred_region
      _
    $region45: #{block_forward.1} parent=1 // pred_fallthru
      _
    // Predicated region
    $region46: #{block_forward.1} parent=1 // pred_check
      _
    $region47: #{block_forward.1} parent=1 // pred_check_branch
      %44 = sbr.rel (0) target = $region49
    $region48: #{block_forward.1} parent=1 // pred_region
      _
    $region49: #{block_forward.1} parent=1 // pred_fallthru
      _
    %v45 = vld [vmem:[%s0] sm:$0xff]
    %v46 = vld [vmem:[%s1] sm:$0xff]
    %v47 = vld [vmem:[%s2] sm:$0xff]
    %v48 = vsub.f32 %v46, %v47
    %49 = vxpose.xlu0.b32.start [1/16] %v45, 128
    %50 = vxpose.xlu0.b32.cont [2/16] 0.0, 128
    %51 = vxpose.xlu0.b32.cont [3/16] 0.0, 128
    %52 = vxpose.xlu0.b32.cont [4/16] 0.0, 128
    %53 = vxpose.xlu0.b32.cont [5/16] 0.0, 128
    %54 = vxpose.xlu0.b32.cont [6/16] 0.0, 128
    %55 = vxpose.xlu0.b32.cont [7/16] 0.0, 128
    %56 = vxpose.xlu0.b32.cont [8/16] 0.0, 128
    %57 = vxpose.xlu0.b32.cont [9/16] 0.0, 128
    %58 = vxpose.xlu0.b32.cont [10/16] 0.0, 128
    %59 = vxpose.xlu0.b32.cont [11/16] 0.0, 128
    %60 = vxpose.xlu0.b32.cont [12/16] 0.0, 128
    %61 = vxpose.xlu0.b32.cont [13/16] 0.0, 128
    %62 = vxpose.xlu0.b32.cont [14/16] 0.0, 128
    %63 = vxpose.xlu0.b32.cont [15/16] 0.0, 128
    %64 = vxpose.xlu0.b32.end [16/16] 0.0, 128
    %v65 = vpop.trf.xlu0
    %v66 = vpop.trf.xlu0
    %v67 = vpop.trf.xlu0
    %v68 = vpop.trf.xlu0
    %v69 = vpop.trf.xlu0
    %v70 = vpop.trf.xlu0
    %v71 = vpop.trf.xlu0
    %v72 = vpop.trf.xlu0
    %v73 = vpop.trf.xlu0
    %v74 = vpop.trf.xlu0
    %v75 = vpop.trf.xlu0
    %v76 = vpop.trf.xlu0
    %v77 = vpop.trf.xlu0
    %v78 = vpop.trf.xlu0
    %v79 = vpop.trf.xlu0
    %v80 = vpop.trf.xlu0
    %vm81 = vcmask 64512
    %v83 = vsel %vm81, %v65, 0
    %v86 = vsel %vm81, %v66, 0
    %v89 = vsel %vm81, %v67, 0
    %v92 = vsel %vm81, %v68, 0
    %v95 = vsel %vm81, %v69, 0
    %v98 = vsel %vm81, %v70, 0
    %v101 = vsel %vm81, %v71, 0
    %v104 = vsel %vm81, %v72, 0
    %v107 = vsel %vm81, %v73, 0
    %v110 = vsel %vm81, %v74, 0
    %v113 = vsel %vm81, %v75, 0
    %v116 = vsel %vm81, %v76, 0
    %v119 = vsel %vm81, %v77, 0
    %v122 = vsel %vm81, %v78, 0
    %v125 = vsel %vm81, %v79, 0
    %v128 = vsel %vm81, %v80, 0
    %130 = vmatprep.subr.mxu0 0.0
    %131 = vmatpush1.msra.mxu0 %v48
    %132 = vmatprep.subr.mxu0 0.0
    %133 = vmatpush1.msra.mxu0 0.0
    %134 = vmatprep.subr.mxu0 0.0
    %135 = vmatpush1.msra.mxu0 0.0
    %136 = vmatprep.subr.mxu0 0.0
    %137 = vmatpush1.msra.mxu0 0.0
    %138 = vmatprep.subr.mxu0 0.0
    %139 = vmatpush1.msra.mxu0 0.0
    %140 = vmatprep.subr.mxu0 0.0
    %141 = vmatpush1.msra.mxu0 0.0
    %142 = vmatprep.subr.mxu0 0.0
    %143 = vmatpush1.msra.mxu0 0.0
    %144 = vmatprep.subr.mxu0 0.0
    %145 = vmatpush1.msra.mxu0 0.0
    %146 = vmatprep.subr.mxu0 0.0
    %147 = vmatpush1.msra.mxu0 0.0
    %148 = vmatprep.subr.mxu0 0.0
    %149 = vmatpush1.msra.mxu0 0.0
    %150 = vmatprep.subr.mxu0 0.0
    %151 = vmatpush1.msra.mxu0 0.0
    %152 = vmatprep.subr.mxu0 0.0
    %153 = vmatpush1.msra.mxu0 0.0
    %154 = vmatprep.subr.mxu0 0.0
    %155 = vmatpush1.msra.mxu0 0.0
    %156 = vmatprep.subr.mxu0 0.0
    %157 = vmatpush1.msra.mxu0 0.0
    %158 = vmatprep.subr.mxu0 0.0
    %159 = vmatpush1.msra.mxu0 0.0
    %160 = vmatprep.subr.mxu0 0.0
    %161 = vmatpush1.msra.mxu0 0.0
    %162 = vmatprep.subr.mxu0 0.0
    %163 = vmatpush1.msra.mxu0 0.0
    %164 = vmatprep.subr.mxu0 0.0
    %165 = vmatpush1.msra.mxu0 0.0
    %166 = vmatprep.subr.mxu0 0.0
    %167 = vmatpush1.msra.mxu0 0.0
    %168 = vmatprep.subr.mxu0 0.0
    %169 = vmatpush1.msra.mxu0 0.0
    %170 = vmatprep.subr.mxu0 0.0
    %171 = vmatpush1.msra.mxu0 0.0
    %172 = vmatprep.subr.mxu0 0.0
    %173 = vmatpush1.msra.mxu0 0.0
    %174 = vmatprep.subr.mxu0 0.0
    %175 = vmatpush1.msra.mxu0 0.0
    %176 = vmatprep.subr.mxu0 0.0
    %177 = vmatpush1.msra.mxu0 0.0
    %178 = vmatprep.subr.mxu0 0.0
    %179 = vmatpush1.msra.mxu0 0.0
    %180 = vmatprep.subr.mxu0 0.0
    %181 = vmatpush1.msra.mxu0 0.0
    %182 = vmatprep.subr.mxu0 0.0
    %183 = vmatpush1.msra.mxu0 0.0
    %184 = vmatprep.subr.mxu0 0.0
    %185 = vmatpush1.msra.mxu0 0.0
    %186 = vmatprep.subr.mxu0 0.0
    %187 = vmatpush1.msra.mxu0 0.0
    %188 = vmatprep.subr.mxu0 0.0
    %189 = vmatpush1.msra.mxu0 0.0
    %190 = vmatprep.subr.mxu0 0.0
    %191 = vmatpush1.msra.mxu0 0.0
    %192 = vmatprep.subr.mxu0 0.0
    %193 = vmatpush1.msra.mxu0 0.0
    %194 = vmatprep.mubr.f32.mxu0 0.0
    %195 = vmatmul.mubr.f32.gmra.mrb[0].mxu0 %v83
    %v196 = vpop.f32.mrb[0].mxu0
    %v197 = vadd.f32 0.0, %v196
    %v198 = vpop.f32.mrb[0].mxu0
    %199 = vmatprep.mubr.f32.mxu0 0.0
    %200 = vmatmul.mubr.f32.gmra.mrb[0].mxu0 %v86
    %v201 = vpop.f32.mrb[0].mxu0
    %v202 = vadd.f32 0.0, %v201
    %v203 = vpop.f32.mrb[0].mxu0
    %204 = vmatprep.mubr.f32.mxu0 0.0
    %205 = vmatmul.mubr.f32.gmra.mrb[0].mxu0 %v89
    %v206 = vpop.f32.mrb[0].mxu0
    %v207 = vadd.f32 0.0, %v206
    %v208 = vpop.f32.mrb[0].mxu0
    %209 = vmatprep.mubr.f32.mxu0 0.0
    %210 = vmatmul.mubr.f32.gmra.mrb[0].mxu0 %v92
    %v211 = vpop.f32.mrb[0].mxu0
    %v212 = vadd.f32 0.0, %v211
    %v213 = vpop.f32.mrb[0].mxu0
    %214 = vmatprep.mubr.f32.mxu0 0.0
    %215 = vmatmul.mubr.f32.gmra.mrb[0].mxu0 %v95
    %v216 = vpop.f32.mrb[0].mxu0
    %v217 = vadd.f32 0.0, %v216
    %v218 = vpop.f32.mrb[0].mxu0
    %219 = vmatprep.mubr.f32.mxu0 0.0
    %220 = vmatmul.mubr.f32.gmra.mrb[0].mxu0 %v98
    %v221 = vpop.f32.mrb[0].mxu0
    %v222 = vadd.f32 0.0, %v221
    %v223 = vpop.f32.mrb[0].mxu0
    %224 = vmatprep.mubr.f32.mxu0 0.0
    %225 = vmatmul.mubr.f32.gmra.mrb[0].mxu0 %v101
    %v226 = vpop.f32.mrb[0].mxu0
    %v227 = vadd.f32 0.0, %v226
    %v228 = vpop.f32.mrb[0].mxu0
    %229 = vmatprep.mubr.f32.mxu0 0.0
    %230 = vmatmul.mubr.f32.gmra.mrb[0].mxu0 %v104
    %v231 = vpop.f32.mrb[0].mxu0
    %v232 = vadd.f32 0.0, %v231
    %v233 = vpop.f32.mrb[0].mxu0
    %234 = vmatprep.mubr.f32.mxu0 0.0
    %235 = vmatmul.mubr.f32.gmra.mrb[0].mxu0 %v107
    %v236 = vpop.f32.mrb[0].mxu0
    %v237 = vadd.f32 0.0, %v236
    %v238 = vpop.f32.mrb[0].mxu0
    %239 = vmatprep.mubr.f32.mxu0 0.0
    %240 = vmatmul.mubr.f32.gmra.mrb[0].mxu0 %v110
    %v241 = vpop.f32.mrb[0].mxu0
    %v242 = vadd.f32 0.0, %v241
    %v243 = vpop.f32.mrb[0].mxu0
    %244 = vmatprep.mubr.f32.mxu0 0.0
    %245 = vmatmul.mubr.f32.gmra.mrb[0].mxu0 %v113
    %v246 = vpop.f32.mrb[0].mxu0
    %v247 = vadd.f32 0.0, %v246
    %v248 = vpop.f32.mrb[0].mxu0
    %249 = vmatprep.mubr.f32.mxu0 0.0
    %250 = vmatmul.mubr.f32.gmra.mrb[0].mxu0 %v116
    %v251 = vpop.f32.mrb[0].mxu0
    %v252 = vadd.f32 0.0, %v251
    %v253 = vpop.f32.mrb[0].mxu0
    %254 = vmatprep.mubr.f32.mxu0 0.0
    %255 = vmatmul.mubr.f32.gmra.mrb[0].mxu0 %v119
    %v256 = vpop.f32.mrb[0].mxu0
    %v257 = vadd.f32 0.0, %v256
    %v258 = vpop.f32.mrb[0].mxu0
    %259 = vmatprep.mubr.f32.mxu0 0.0
    %260 = vmatmul.mubr.f32.gmra.mrb[0].mxu0 %v122
    %v261 = vpop.f32.mrb[0].mxu0
    %v262 = vadd.f32 0.0, %v261
    %v263 = vpop.f32.mrb[0].mxu0
    %264 = vmatprep.mubr.f32.mxu0 0.0
    %265 = vmatmul.mubr.f32.gmra.mrb[0].mxu0 %v125
    %v266 = vpop.f32.mrb[0].mxu0
    %v267 = vadd.f32 0.0, %v266
    %v268 = vpop.f32.mrb[0].mxu0
    %269 = vmatprep.mubr.f32.mxu0 0.0
    %270 = vmatmul.mubr.f32.gmra.mrb[0].mxu0 %v128
    %v271 = vpop.f32.mrb[0].mxu0
    %v272 = vadd.f32 0.0, %v271
    %v273 = vpop.f32.mrb[0].mxu0
    %274 = vdwg.mxu0
    %v275 = vld [vmem:[%s5] sm:$0x1]
    %v276 = vadd.f32 %v197, %v202
    %v277 = vadd.f32 %v276, %v207
    %v278 = vadd.f32 %v277, %v212
    %v279 = vadd.f32 %v278, %v217
    %v280 = vadd.f32 %v279, %v222
    %v281 = vadd.f32 %v280, %v227
    %v282 = vadd.f32 %v281, %v232
    %v283 = vadd.f32 %v282, %v237
    %v284 = vadd.f32 %v283, %v242
    %v285 = vadd.f32 %v284, %v247
    %v286 = vadd.f32 %v285, %v252
    %v287 = vadd.f32 %v286, %v257
    %v288 = vadd.f32 %v287, %v262
    %v289 = vadd.f32 %v288, %v267
    %v290 = vadd.f32 %v289, %v272
    %v291 = vrot.slane %v290, 4
    %v292 = vadd.f32 %v290, %v291
    %v293 = vrot.slane %v292, 2
    %v294 = vadd.f32 %v292, %v293
    %v295 = vrot.slane %v294, 1
    %v296 = vadd.f32 %v294, %v295
    %v297 = vmul.f32 %v296, 0.0625
    %v298 = vmul.f32 %v197, %v197
    %v299 = vmul.f32 %v202, %v202
    %v300 = vmul.f32 %v207, %v207
    %v301 = vmul.f32 %v212, %v212
    %v302 = vmul.f32 %v217, %v217
    %v303 = vmul.f32 %v222, %v222
    %v304 = vmul.f32 %v227, %v227
    %v305 = vmul.f32 %v232, %v232
    %v306 = vmul.f32 %v237, %v237
    %v307 = vmul.f32 %v242, %v242
    %v308 = vmul.f32 %v247, %v247
    %v309 = vmul.f32 %v252, %v252
    %v310 = vmul.f32 %v257, %v257
    %v311 = vmul.f32 %v262, %v262
    %v312 = vmul.f32 %v267, %v267
    %v313 = vmul.f32 %v272, %v272
    %v314 = vadd.f32 %v298, %v299
    %v315 = vadd.f32 %v314, %v300
    %v316 = vadd.f32 %v315, %v301
    %v317 = vadd.f32 %v316, %v302
    %v318 = vadd.f32 %v317, %v303
    %v319 = vadd.f32 %v318, %v304
    %v320 = vadd.f32 %v319, %v305
    %v321 = vadd.f32 %v320, %v306
    %v322 = vadd.f32 %v321, %v307
    %v323 = vadd.f32 %v322, %v308
    %v324 = vadd.f32 %v323, %v309
    %v325 = vadd.f32 %v324, %v310
    %v326 = vadd.f32 %v325, %v311
    %v327 = vadd.f32 %v326, %v312
    %v328 = vadd.f32 %v327, %v313
    %v329 = vrot.slane %v328, 4
    %v330 = vadd.f32 %v328, %v329
    %v331 = vrot.slane %v330, 2
    %v332 = vadd.f32 %v330, %v331
    %v333 = vrot.slane %v332, 1
    %v334 = vadd.f32 %v332, %v333
    %v335 = vmul.f32 %v334, 0.0625
    %v336 = vmul.f32 %v297, %v297
    %v337 = vsub.f32 %v335, %v336
    %v338 = vmax.f32 %v337, 0.0
    %v339 = vadd.f32 %v338, 1e-05
    %v340 = vrsqrt.pop %v339
    %v341 = vmul.f32 %v275, %v340
    %v342 = vsub.f32 %v197, %v297
    %v343 = vsub.f32 %v202, %v297
    %v344 = vsub.f32 %v207, %v297
    %v345 = vsub.f32 %v212, %v297
    %v346 = vsub.f32 %v217, %v297
    %v347 = vsub.f32 %v222, %v297
    %v348 = vsub.f32 %v227, %v297
    %v349 = vsub.f32 %v232, %v297
    %v350 = vsub.f32 %v237, %v297
    %v351 = vsub.f32 %v242, %v297
    %v352 = vsub.f32 %v247, %v297
    %v353 = vsub.f32 %v252, %v297
    %v354 = vsub.f32 %v257, %v297
    %v355 = vsub.f32 %v262, %v297
    %v356 = vsub.f32 %v267, %v297
    %v357 = vsub.f32 %v272, %v297
    %v359 = vlaneseq
    %v360 = vshrl.u32 %v359, 7
    %v361 = vsub.s32 0, %v360
    %v362 = vrot.slane %v341, %v361
    %v364 = vmul.f32 %v342, %v362
    %v365 = vmul.f32 %v343, %v362
    %v366 = vmul.f32 %v344, %v362
    %v367 = vmul.f32 %v345, %v362
    %v368 = vmul.f32 %v346, %v362
    %v369 = vmul.f32 %v347, %v362
    %v370 = vmul.f32 %v348, %v362
    %v371 = vmul.f32 %v349, %v362
    %v372 = vmul.f32 %v350, %v362
    %v373 = vmul.f32 %v351, %v362
    %v374 = vmul.f32 %v352, %v362
    %v375 = vmul.f32 %v353, %v362
    %v376 = vmul.f32 %v354, %v362
    %v377 = vmul.f32 %v355, %v362
    %v378 = vmul.f32 %v356, %v362
    %v379 = vmul.f32 %v357, %v362
    %v380 = vld [vmem:[%s3] sm:$0xff]
    %v381 = vld [vmem:[%s3 + $0x8] sm:$0xff]
    %v382 = vld [vmem:[%s3 + $0x10] sm:$0xff]
    %v383 = vld [vmem:[%s3 + $0x18] sm:$0xff]
    %v384 = vld [vmem:[%s3 + $0x20] sm:$0xff]
    %v385 = vld [vmem:[%s3 + $0x28] sm:$0xff]
    %v386 = vld [vmem:[%s3 + $0x30] sm:$0xff]
    %v387 = vld [vmem:[%s3 + $0x38] sm:$0xff]
    %v388 = vld [vmem:[%s3 + $0x40] sm:$0xff]
    %v389 = vld [vmem:[%s3 + $0x48] sm:$0xff]
    %v390 = vld [vmem:[%s3 + $0x50] sm:$0xff]
    %v391 = vld [vmem:[%s3 + $0x58] sm:$0xff]
    %v392 = vld [vmem:[%s3 + $0x60] sm:$0xff]
    %v393 = vld [vmem:[%s3 + $0x68] sm:$0xff]
    %v394 = vld [vmem:[%s3 + $0x70] sm:$0xff]
    %v395 = vld [vmem:[%s3 + $0x78] sm:$0xff]
    %v396 = vld [vmem:[%s4] sm:$0x1]
    %v398 = vlaneseq
    %v399 = vshrl.u32 %v398, 7
    %v400 = vsub.s32 0, %v399
    %v401 = vrot.slane %v396, %v400
    %403 = vmatprep.subr.mxu0 0.0
    %404 = vmatpush1.xpose.msra.mxu0 %v380
    %405 = vmatprep.subr.mxu0 0.0
    %406 = vmatpush1.xpose.msra.mxu0 %v381
    %407 = vmatprep.subr.mxu0 0.0
    %408 = vmatpush1.xpose.msra.mxu0 %v382
    %409 = vmatprep.subr.mxu0 0.0
    %410 = vmatpush1.xpose.msra.mxu0 %v383
    %411 = vmatprep.subr.mxu0 0.0
    %412 = vmatpush1.xpose.msra.mxu0 %v384
    %413 = vmatprep.subr.mxu0 0.0
    %414 = vmatpush1.xpose.msra.mxu0 %v385
    %415 = vmatprep.subr.mxu0 0.0
    %416 = vmatpush1.xpose.msra.mxu0 %v386
    %417 = vmatprep.subr.mxu0 0.0
    %418 = vmatpush1.xpose.msra.mxu0 %v387
    %419 = vmatprep.subr.mxu0 0.0
    %420 = vmatpush1.xpose.msra.mxu0 %v388
    %421 = vmatprep.subr.mxu0 0.0
    %422 = vmatpush1.xpose.msra.mxu0 %v389
    %423 = vmatprep.subr.mxu0 0.0
    %424 = vmatpush1.xpose.msra.mxu0 %v390
    %425 = vmatprep.subr.mxu0 0.0
    %426 = vmatpush1.xpose.msra.mxu0 %v391
    %427 = vmatprep.subr.mxu0 0.0
    %428 = vmatpush1.xpose.msra.mxu0 %v392
    %429 = vmatprep.subr.mxu0 0.0
    %430 = vmatpush1.xpose.msra.mxu0 %v393
    %431 = vmatprep.subr.mxu0 0.0
    %432 = vmatpush1.xpose.msra.mxu0 %v394
    %433 = vmatprep.subr.mxu0 0.0
    %434 = vmatpush1.xpose.msra.mxu0 %v395
    %435 = vmatprep.subr.mxu0 0.0
    %436 = vmatpush1.xpose.msra.mxu0 0.0
    %437 = vmatprep.subr.mxu0 0.0
    %438 = vmatpush1.xpose.msra.mxu0 0.0
    %439 = vmatprep.subr.mxu0 0.0
    %440 = vmatpush1.xpose.msra.mxu0 0.0
    %441 = vmatprep.subr.mxu0 0.0
    %442 = vmatpush1.xpose.msra.mxu0 0.0
    %443 = vmatprep.subr.mxu0 0.0
    %444 = vmatpush1.xpose.msra.mxu0 0.0
    %445 = vmatprep.subr.mxu0 0.0
    %446 = vmatpush1.xpose.msra.mxu0 0.0
    %447 = vmatprep.subr.mxu0 0.0
    %448 = vmatpush1.xpose.msra.mxu0 0.0
    %449 = vmatprep.subr.mxu0 0.0
    %450 = vmatpush1.xpose.msra.mxu0 0.0
    %451 = vmatprep.subr.mxu0 0.0
    %452 = vmatpush1.xpose.msra.mxu0 0.0
    %453 = vmatprep.subr.mxu0 0.0
    %454 = vmatpush1.xpose.msra.mxu0 0.0
    %455 = vmatprep.subr.mxu0 0.0
    %456 = vmatpush1.xpose.msra.mxu0 0.0
    %457 = vmatprep.subr.mxu0 0.0
    %458 = vmatpush1.xpose.msra.mxu0 0.0
    %459 = vmatprep.subr.mxu0 0.0
    %460 = vmatpush1.xpose.msra.mxu0 0.0
    %461 = vmatprep.subr.mxu0 0.0
    %462 = vmatpush1.xpose.msra.mxu0 0.0
    %463 = vmatprep.subr.mxu0 0.0
    %464 = vmatpush1.xpose.msra.mxu0 0.0
    %465 = vmatprep.subr.mxu0 0.0
    %466 = vmatpush1.xpose.msra.mxu0 0.0
    %467 = vmatprep.mubr.f32.mxu0 0.0
    %468 = vmatmul.mubr.f32.gmra.mrb[0].mxu0 %v364
    %v469 = vpop.f32.mrb[0].mxu0
    %v470 = vadd.f32 %v401, %v469
    %v471 = vpop.f32.mrb[0].mxu0
    %472 = vmatprep.mubr.f32.mxu0 0.0
    %473 = vmatmul.mubr.f32.gmra.mrb[0].mxu0 %v365
    %v474 = vpop.f32.mrb[0].mxu0
    %v475 = vadd.f32 %v401, %v474
    %v476 = vpop.f32.mrb[0].mxu0
    %477 = vmatprep.mubr.f32.mxu0 0.0
    %478 = vmatmul.mubr.f32.gmra.mrb[0].mxu0 %v366
    %v479 = vpop.f32.mrb[0].mxu0
    %v480 = vadd.f32 %v401, %v479
    %v481 = vpop.f32.mrb[0].mxu0
    %482 = vmatprep.mubr.f32.mxu0 0.0
    %483 = vmatmul.mubr.f32.gmra.mrb[0].mxu0 %v367
    %v484 = vpop.f32.mrb[0].mxu0
    %v485 = vadd.f32 %v401, %v484
    %v486 = vpop.f32.mrb[0].mxu0
    %487 = vmatprep.mubr.f32.mxu0 0.0
    %488 = vmatmul.mubr.f32.gmra.mrb[0].mxu0 %v368
    %v489 = vpop.f32.mrb[0].mxu0
    %v490 = vadd.f32 %v401, %v489
    %v491 = vpop.f32.mrb[0].mxu0
    %492 = vmatprep.mubr.f32.mxu0 0.0
    %493 = vmatmul.mubr.f32.gmra.mrb[0].mxu0 %v369
    %v494 = vpop.f32.mrb[0].mxu0
    %v495 = vadd.f32 %v401, %v494
    %v496 = vpop.f32.mrb[0].mxu0
    %497 = vmatprep.mubr.f32.mxu0 0.0
    %498 = vmatmul.mubr.f32.gmra.mrb[0].mxu0 %v370
    %v499 = vpop.f32.mrb[0].mxu0
    %v500 = vadd.f32 %v401, %v499
    %v501 = vpop.f32.mrb[0].mxu0
    %502 = vmatprep.mubr.f32.mxu0 0.0
    %503 = vmatmul.mubr.f32.gmra.mrb[0].mxu0 %v371
    %v504 = vpop.f32.mrb[0].mxu0
    %v505 = vadd.f32 %v401, %v504
    %v506 = vpop.f32.mrb[0].mxu0
    %507 = vmatprep.mubr.f32.mxu0 0.0
    %508 = vmatmul.mubr.f32.gmra.mrb[0].mxu0 %v372
    %v509 = vpop.f32.mrb[0].mxu0
    %v510 = vadd.f32 %v401, %v509
    %v511 = vpop.f32.mrb[0].mxu0
    %512 = vmatprep.mubr.f32.mxu0 0.0
    %513 = vmatmul.mubr.f32.gmra.mrb[0].mxu0 %v373
    %v514 = vpop.f32.mrb[0].mxu0
    %v515 = vadd.f32 %v401, %v514
    %v516 = vpop.f32.mrb[0].mxu0
    %517 = vmatprep.mubr.f32.mxu0 0.0
    %518 = vmatmul.mubr.f32.gmra.mrb[0].mxu0 %v374
    %v519 = vpop.f32.mrb[0].mxu0
    %v520 = vadd.f32 %v401, %v519
    %v521 = vpop.f32.mrb[0].mxu0
    %522 = vmatprep.mubr.f32.mxu0 0.0
    %523 = vmatmul.mubr.f32.gmra.mrb[0].mxu0 %v375
    %v524 = vpop.f32.mrb[0].mxu0
    %v525 = vadd.f32 %v401, %v524
    %v526 = vpop.f32.mrb[0].mxu0
    %527 = vmatprep.mubr.f32.mxu0 0.0
    %528 = vmatmul.mubr.f32.gmra.mrb[0].mxu0 %v376
    %v529 = vpop.f32.mrb[0].mxu0
    %v530 = vadd.f32 %v401, %v529
    %v531 = vpop.f32.mrb[0].mxu0
    %532 = vmatprep.mubr.f32.mxu0 0.0
    %533 = vmatmul.mubr.f32.gmra.mrb[0].mxu0 %v377
    %v534 = vpop.f32.mrb[0].mxu0
    %v535 = vadd.f32 %v401, %v534
    %v536 = vpop.f32.mrb[0].mxu0
    %537 = vmatprep.mubr.f32.mxu0 0.0
    %538 = vmatmul.mubr.f32.gmra.mrb[0].mxu0 %v378
    %v539 = vpop.f32.mrb[0].mxu0
    %v540 = vadd.f32 %v401, %v539
    %v541 = vpop.f32.mrb[0].mxu0
    %542 = vmatprep.mubr.f32.mxu0 0.0
    %543 = vmatmul.mubr.f32.gmra.mrb[0].mxu0 %v379
    %v544 = vpop.f32.mrb[0].mxu0
    %v545 = vadd.f32 %v401, %v544
    %v546 = vpop.f32.mrb[0].mxu0
    %547 = vdwg.mxu0
    %548 = vmatprep.subr.mxu0 0.0
    %549 = vmatpush1.msra.mxu0 %v470
    %550 = vmatprep.subr.mxu0 0.0
    %551 = vmatpush1.msra.mxu0 %v475
    %552 = vmatprep.subr.mxu0 0.0
    %553 = vmatpush1.msra.mxu0 %v480
    %554 = vmatprep.subr.mxu0 0.0
    %555 = vmatpush1.msra.mxu0 %v485
    %556 = vmatprep.subr.mxu0 0.0
    %557 = vmatpush1.msra.mxu0 %v490
    %558 = vmatprep.subr.mxu0 0.0
    %559 = vmatpush1.msra.mxu0 %v495
    %560 = vmatprep.subr.mxu0 0.0
    %561 = vmatpush1.msra.mxu0 %v500
    %562 = vmatprep.subr.mxu0 0.0
    %563 = vmatpush1.msra.mxu0 %v505
    %564 = vmatprep.subr.mxu0 0.0
    %565 = vmatpush1.msra.mxu0 %v510
    %566 = vmatprep.subr.mxu0 0.0
    %567 = vmatpush1.msra.mxu0 %v515
    %568 = vmatprep.subr.mxu0 0.0
    %569 = vmatpush1.msra.mxu0 %v520
    %570 = vmatprep.subr.mxu0 0.0
    %571 = vmatpush1.msra.mxu0 %v525
    %572 = vmatprep.subr.mxu0 0.0
    %573 = vmatpush1.msra.mxu0 %v530
    %574 = vmatprep.subr.mxu0 0.0
    %575 = vmatpush1.msra.mxu0 %v535
    %576 = vmatprep.subr.mxu0 0.0
    %577 = vmatpush1.msra.mxu0 %v540
    %578 = vmatprep.subr.mxu0 0.0
    %579 = vmatpush1.msra.mxu0 %v545
    %580 = vmatprep.subr.mxu0 0.0
    %581 = vmatpush1.msra.mxu0 0.0
    %582 = vmatprep.subr.mxu0 0.0
    %583 = vmatpush1.msra.mxu0 0.0
    %584 = vmatprep.subr.mxu0 0.0
    %585 = vmatpush1.msra.mxu0 0.0
    %586 = vmatprep.subr.mxu0 0.0
    %587 = vmatpush1.msra.mxu0 0.0
    %588 = vmatprep.subr.mxu0 0.0
    %589 = vmatpush1.msra.mxu0 0.0
    %590 = vmatprep.subr.mxu0 0.0
    %591 = vmatpush1.msra.mxu0 0.0
    %592 = vmatprep.subr.mxu0 0.0
    %593 = vmatpush1.msra.mxu0 0.0
    %594 = vmatprep.subr.mxu0 0.0
    %595 = vmatpush1.msra.mxu0 0.0
    %596 = vmatprep.subr.mxu0 0.0
    %597 = vmatpush1.msra.mxu0 0.0
    %598 = vmatprep.subr.mxu0 0.0
    %599 = vmatpush1.msra.mxu0 0.0
    %600 = vmatprep.subr.mxu0 0.0
    %601 = vmatpush1.msra.mxu0 0.0
    %602 = vmatprep.subr.mxu0 0.0
    %603 = vmatpush1.msra.mxu0 0.0
    %604 = vmatprep.subr.mxu0 0.0
    %605 = vmatpush1.msra.mxu0 0.0
    %606 = vmatprep.subr.mxu0 0.0
    %607 = vmatpush1.msra.mxu0 0.0
    %608 = vmatprep.subr.mxu0 0.0
    %609 = vmatpush1.msra.mxu0 0.0
    %610 = vmatprep.subr.mxu0 0.0
    %611 = vmatpush1.msra.mxu0 0.0
    %612 = vmatprep.mubr.f32.mxu0 0.0
    %613 = vmatmul.mubr.f32.gmra.mrb[0].mxu0 %v45
    %v614 = vpop.f32.mrb[0].mxu0
    %v615 = vadd.f32 0.0, %v614
    %v616 = vpop.f32.mrb[0].mxu0
    %617 = vdwg.mxu0
    %v618 = vsub.f32 %v46, %v615
    %619 = vst [vmem:[#allocation4] sm:$0xff] %v618
    %620 = vmatprep.subr.mxu0 0.0
    %621 = vmatpush1.xpose.msra.mxu0 %v470
    %622 = vmatprep.subr.mxu0 0.0
    %623 = vmatpush1.xpose.msra.mxu0 %v475
    %624 = vmatprep.subr.mxu0 0.0
    %625 = vmatpush1.xpose.msra.mxu0 %v480
    %626 = vmatprep.subr.mxu0 0.0
    %627 = vmatpush1.xpose.msra.mxu0 %v485
    %628 = vmatprep.subr.mxu0 0.0
    %629 = vmatpush1.xpose.msra.mxu0 %v490
    %630 = vmatprep.subr.mxu0 0.0
    %631 = vmatpush1.xpose.msra.mxu0 %v495
    %632 = vmatprep.subr.mxu0 0.0
    %633 = vmatpush1.xpose.msra.mxu0 %v500
    %634 = vmatprep.subr.mxu0 0.0
    %635 = vmatpush1.xpose.msra.mxu0 %v505
    %636 = vmatprep.subr.mxu0 0.0
    %637 = vmatpush1.xpose.msra.mxu0 %v510
    %638 = vmatprep.subr.mxu0 0.0
    %639 = vmatpush1.xpose.msra.mxu0 %v515
    %640 = vmatprep.subr.mxu0 0.0
    %641 = vmatpush1.xpose.msra.mxu0 %v520
    %642 = vmatprep.subr.mxu0 0.0
    %643 = vmatpush1.xpose.msra.mxu0 %v525
    %644 = vmatprep.subr.mxu0 0.0
    %645 = vmatpush1.xpose.msra.mxu0 %v530
    %646 = vmatprep.subr.mxu0 0.0
    %647 = vmatpush1.xpose.msra.mxu0 %v535
    %648 = vmatprep.subr.mxu0 0.0
    %649 = vmatpush1.xpose.msra.mxu0 %v540
    %650 = vmatprep.subr.mxu0 0.0
    %651 = vmatpush1.xpose.msra.mxu0 %v545
    %652 = vmatprep.subr.mxu0 0.0
    %653 = vmatpush1.xpose.msra.mxu0 0.0
    %654 = vmatprep.subr.mxu0 0.0
    %655 = vmatpush1.xpose.msra.mxu0 0.0
    %656 = vmatprep.subr.mxu0 0.0
    %657 = vmatpush1.xpose.msra.mxu0 0.0
    %658 = vmatprep.subr.mxu0 0.0
    %659 = vmatpush1.xpose.msra.mxu0 0.0
    %660 = vmatprep.subr.mxu0 0.0
    %661 = vmatpush1.xpose.msra.mxu0 0.0
    %662 = vmatprep.subr.mxu0 0.0
    %663 = vmatpush1.xpose.msra.mxu0 0.0
    %664 = vmatprep.subr.mxu0 0.0
    %665 = vmatpush1.xpose.msra.mxu0 0.0
    %666 = vmatprep.subr.mxu0 0.0
    %667 = vmatpush1.xpose.msra.mxu0 0.0
    %668 = vmatprep.subr.mxu0 0.0
    %669 = vmatpush1.xpose.msra.mxu0 0.0
    %670 = vmatprep.subr.mxu0 0.0
    %671 = vmatpush1.xpose.msra.mxu0 0.0
    %672 = vmatprep.subr.mxu0 0.0
    %673 = vmatpush1.xpose.msra.mxu0 0.0
    %674 = vmatprep.subr.mxu0 0.0
    %675 = vmatpush1.xpose.msra.mxu0 0.0
    %676 = vmatprep.subr.mxu0 0.0
    %677 = vmatpush1.xpose.msra.mxu0 0.0
    %678 = vmatprep.subr.mxu0 0.0
    %679 = vmatpush1.xpose.msra.mxu0 0.0
    %680 = vmatprep.subr.mxu0 0.0
    %681 = vmatpush1.xpose.msra.mxu0 0.0
    %682 = vmatprep.subr.mxu0 0.0
    %683 = vmatpush1.xpose.msra.mxu0 0.0
    %684 = vmatprep.mubr.f32.mxu0 0.0
    %685 = vmatmul.mubr.f32.gmra.mrb[0].mxu0 %v615
    %v686 = vpop.f32.mrb[0].mxu0
    %v687 = vadd.f32 0.0, %v686
    %v688 = vpop.f32.mrb[0].mxu0
    %689 = vdwg.mxu0
    %v690 = vld [vmem:[%s11] sm:$0x1]
    %v691 = vrot.slane %v687, 4
    %v692 = vadd.f32 %v687, %v691
    %v693 = vrot.slane %v692, 2
    %v694 = vadd.f32 %v692, %v693
    %v695 = vrot.slane %v694, 1
    %v696 = vadd.f32 %v694, %v695
    %v697 = vmul.f32 %v696, 0.125
    %v698 = vmul.f32 %v687, %v687
    %v699 = vrot.slane %v698, 4
    %v700 = vadd.f32 %v698, %v699
    %v701 = vrot.slane %v700, 2
    %v702 = vadd.f32 %v700, %v701
    %v703 = vrot.slane %v702, 1
    %v704 = vadd.f32 %v702, %v703
    %v705 = vmul.f32 %v704, 0.125
    %v706 = vmul.f32 %v697, %v697
    %v707 = vsub.f32 %v705, %v706
    %v708 = vmax.f32 %v707, 0.0
    %v709 = vadd.f32 %v708, 1e-05
    %v710 = vrsqrt.pop %v709
    %v711 = vmul.f32 %v690, %v710
    %v712 = vsub.f32 %v687, %v697
    %v714 = vlaneseq
    %v715 = vshrl.u32 %v714, 7
    %v716 = vsub.s32 0, %v715
    %v717 = vrot.slane %v711, %v716
    %v719 = vmul.f32 %v712, %v717
    %v720 = vld [vmem:[%s9] sm:$0xff]
    %v721 = vld [vmem:[%s9 + $0x8] sm:$0xff]
    %v722 = vld [vmem:[%s9 + $0x10] sm:$0xff]
    %v723 = vld [vmem:[%s9 + $0x18] sm:$0xff]
    %v724 = vld [vmem:[%s9 + $0x20] sm:$0xff]
    %v725 = vld [vmem:[%s9 + $0x28] sm:$0xff]
    %v726 = vld [vmem:[%s9 + $0x30] sm:$0xff]
    %v727 = vld [vmem:[%s9 + $0x38] sm:$0xff]
    %v728 = vld [vmem:[%s9 + $0x40] sm:$0xff]
    %v729 = vld [vmem:[%s9 + $0x48] sm:$0xff]
    %v730 = vld [vmem:[%s9 + $0x50] sm:$0xff]
    %v731 = vld [vmem:[%s9 + $0x58] sm:$0xff]
    %v732 = vld [vmem:[%s9 + $0x60] sm:$0xff]
    %v733 = vld [vmem:[%s9 + $0x68] sm:$0xff]
    %v734 = vld [vmem:[%s9 + $0x70] sm:$0xff]
    %v735 = vld [vmem:[%s9 + $0x78] sm:$0xff]
    %v736 = vld [vmem:[%s10] sm:$0x1]
    %v738 = vlaneseq
    %v739 = vshrl.u32 %v738, 7
    %v740 = vsub.s32 0, %v739
    %v741 = vrot.slane %v736, %v740
    %743 = vmatprep.subr.mxu0 0.0
    %744 = vmatpush1.xpose.msra.mxu0 %v720
    %745 = vmatprep.subr.mxu0 0.0
    %746 = vmatpush1.xpose.msra.mxu0 %v721
    %747 = vmatprep.subr.mxu0 0.0
    %748 = vmatpush1.xpose.msra.mxu0 %v722
    %749 = vmatprep.subr.mxu0 0.0
    %750 = vmatpush1.xpose.msra.mxu0 %v723
    %751 = vmatprep.subr.mxu0 0.0
    %752 = vmatpush1.xpose.msra.mxu0 %v724
    %753 = vmatprep.subr.mxu0 0.0
    %754 = vmatpush1.xpose.msra.mxu0 %v725
    %755 = vmatprep.subr.mxu0 0.0
    %756 = vmatpush1.xpose.msra.mxu0 %v726
    %757 = vmatprep.subr.mxu0 0.0
    %758 = vmatpush1.xpose.msra.mxu0 %v727
    %759 = vmatprep.subr.mxu0 0.0
    %760 = vmatpush1.xpose.msra.mxu0 %v728
    %761 = vmatprep.subr.mxu0 0.0
    %762 = vmatpush1.xpose.msra.mxu0 %v729
    %763 = vmatprep.subr.mxu0 0.0
    %764 = vmatpush1.xpose.msra.mxu0 %v730
    %765 = vmatprep.subr.mxu0 0.0
    %766 = vmatpush1.xpose.msra.mxu0 %v731
    %767 = vmatprep.subr.mxu0 0.0
    %768 = vmatpush1.xpose.msra.mxu0 %v732
    %769 = vmatprep.subr.mxu0 0.0
    %770 = vmatpush1.xpose.msra.mxu0 %v733
    %771 = vmatprep.subr.mxu0 0.0
    %772 = vmatpush1.xpose.msra.mxu0 %v734
    %773 = vmatprep.subr.mxu0 0.0
    %774 = vmatpush1.xpose.msra.mxu0 %v735
    %775 = vmatprep.subr.mxu0 0.0
    %776 = vmatpush1.xpose.msra.mxu0 0.0
    %777 = vmatprep.subr.mxu0 0.0
    %778 = vmatpush1.xpose.msra.mxu0 0.0
    %779 = vmatprep.subr.mxu0 0.0
    %780 = vmatpush1.xpose.msra.mxu0 0.0
    %781 = vmatprep.subr.mxu0 0.0
    %782 = vmatpush1.xpose.msra.mxu0 0.0
    %783 = vmatprep.subr.mxu0 0.0
    %784 = vmatpush1.xpose.msra.mxu0 0.0
    %785 = vmatprep.subr.mxu0 0.0
    %786 = vmatpush1.xpose.msra.mxu0 0.0
    %787 = vmatprep.subr.mxu0 0.0
    %788 = vmatpush1.xpose.msra.mxu0 0.0
    %789 = vmatprep.subr.mxu0 0.0
    %790 = vmatpush1.xpose.msra.mxu0 0.0
    %791 = vmatprep.subr.mxu0 0.0
    %792 = vmatpush1.xpose.msra.mxu0 0.0
    %793 = vmatprep.subr.mxu0 0.0
    %794 = vmatpush1.xpose.msra.mxu0 0.0
    %795 = vmatprep.subr.mxu0 0.0
    %796 = vmatpush1.xpose.msra.mxu0 0.0
    %797 = vmatprep.subr.mxu0 0.0
    %798 = vmatpush1.xpose.msra.mxu0 0.0
    %799 = vmatprep.subr.mxu0 0.0
    %800 = vmatpush1.xpose.msra.mxu0 0.0
    %801 = vmatprep.subr.mxu0 0.0
    %802 = vmatpush1.xpose.msra.mxu0 0.0
    %803 = vmatprep.subr.mxu0 0.0
    %804 = vmatpush1.xpose.msra.mxu0 0.0
    %805 = vmatprep.subr.mxu0 0.0
    %806 = vmatpush1.xpose.msra.mxu0 0.0
    %807 = vmatprep.mubr.f32.mxu0 0.0
    %808 = vmatmul.mubr.f32.gmra.mrb[0].mxu0 %v719
    %v809 = vpop.f32.mrb[0].mxu0
    %v810 = vadd.f32 %v741, %v809
    %v811 = vpop.f32.mrb[0].mxu0
    %812 = vdwg.mxu0
    %v813 = vld [vmem:[%s8] sm:$0x1]
    %v814 = vrot.slane %v45, 4
    %v815 = vadd.f32 %v45, %v814
    %v816 = vrot.slane %v815, 2
    %v817 = vadd.f32 %v815, %v816
    %v818 = vrot.slane %v817, 1
    %v819 = vadd.f32 %v817, %v818
    %v820 = vmul.f32 %v819, 0.125
    %v821 = vmul.f32 %v45, %v45
    %v822 = vrot.slane %v821, 4
    %v823 = vadd.f32 %v821, %v822
    %v824 = vrot.slane %v823, 2
    %v825 = vadd.f32 %v823, %v824
    %v826 = vrot.slane %v825, 1
    %v827 = vadd.f32 %v825, %v826
    %v828 = vmul.f32 %v827, 0.125
    %v829 = vmul.f32 %v820, %v820
    %v830 = vsub.f32 %v828, %v829
    %v831 = vmax.f32 %v830, 0.0
    %v832 = vadd.f32 %v831, 1e-05
    %v833 = vrsqrt.pop %v832
    %v834 = vmul.f32 %v813, %v833
    %v835 = vsub.f32 %v45, %v820
    %v837 = vlaneseq
    %v838 = vshrl.u32 %v837, 7
    %v839 = vsub.s32 0, %v838
    %v840 = vrot.slane %v834, %v839
    %v842 = vmul.f32 %v835, %v840
    %v843 = vld [vmem:[%s6] sm:$0xff]
    %v844 = vld [vmem:[%s6 + $0x8] sm:$0xff]
    %v845 = vld [vmem:[%s6 + $0x10] sm:$0xff]
    %v846 = vld [vmem:[%s6 + $0x18] sm:$0xff]
    %v847 = vld [vmem:[%s6 + $0x20] sm:$0xff]
    %v848 = vld [vmem:[%s6 + $0x28] sm:$0xff]
    %v849 = vld [vmem:[%s6 + $0x30] sm:$0xff]
    %v850 = vld [vmem:[%s6 + $0x38] sm:$0xff]
    %v851 = vld [vmem:[%s6 + $0x40] sm:$0xff]
    %v852 = vld [vmem:[%s6 + $0x48] sm:$0xff]
    %v853 = vld [vmem:[%s6 + $0x50] sm:$0xff]
    %v854 = vld [vmem:[%s6 + $0x58] sm:$0xff]
    %v855 = vld [vmem:[%s6 + $0x60] sm:$0xff]
    %v856 = vld [vmem:[%s6 + $0x68] sm:$0xff]
    %v857 = vld [vmem:[%s6 + $0x70] sm:$0xff]
    %v858 = vld [vmem:[%s6 + $0x78] sm:$0xff]
    %v859 = vld [vmem:[%s7] sm:$0x1]
    %v861 = vlaneseq
    %v862 = vshrl.u32 %v861, 7
    %v863 = vsub.s32 0, %v862
    %v864 = vrot.slane %v859, %v863
    %866 = vmatprep.subr.mxu0 0.0
    %867 = vmatpush1.xpose.msra.mxu0 %v843
    %868 = vmatprep.subr.mxu0 0.0
    %869 = vmatpush1.xpose.msra.mxu0 %v844
    %870 = vmatprep.subr.mxu0 0.0
    %871 = vmatpush1.xpose.msra.mxu0 %v845
    %872 = vmatprep.subr.mxu0 0.0
    %873 = vmatpush1.xpose.msra.mxu0 %v846
    %874 = vmatprep.subr.mxu0 0.0
    %875 = vmatpush1.xpose.msra.mxu0 %v847
    %876 = vmatprep.subr.mxu0 0.0
    %877 = vmatpush1.xpose.msra.mxu0 %v848
    %878 = vmatprep.subr.mxu0 0.0
    %879 = vmatpush1.xpose.msra.mxu0 %v849
    %880 = vmatprep.subr.mxu0 0.0
    %881 = vmatpush1.xpose.msra.mxu0 %v850
    %882 = vmatprep.subr.mxu0 0.0
    %883 = vmatpush1.xpose.msra.mxu0 %v851
    %884 = vmatprep.subr.mxu0 0.0
    %885 = vmatpush1.xpose.msra.mxu0 %v852
    %886 = vmatprep.subr.mxu0 0.0
    %887 = vmatpush1.xpose.msra.mxu0 %v853
    %888 = vmatprep.subr.mxu0 0.0
    %889 = vmatpush1.xpose.msra.mxu0 %v854
    %890 = vmatprep.subr.mxu0 0.0
    %891 = vmatpush1.xpose.msra.mxu0 %v855
    %892 = vmatprep.subr.mxu0 0.0
    %893 = vmatpush1.xpose.msra.mxu0 %v856
    %894 = vmatprep.subr.mxu0 0.0
    %895 = vmatpush1.xpose.msra.mxu0 %v857
    %896 = vmatprep.subr.mxu0 0.0
    %897 = vmatpush1.xpose.msra.mxu0 %v858
    %898 = vmatprep.subr.mxu0 0.0
    %899 = vmatpush1.xpose.msra.mxu0 0.0
    %900 = vmatprep.subr.mxu0 0.0
    %901 = vmatpush1.xpose.msra.mxu0 0.0
    %902 = vmatprep.subr.mxu0 0.0
    %903 = vmatpush1.xpose.msra.mxu0 0.0
    %904 = vmatprep.subr.mxu0 0.0
    %905 = vmatpush1.xpose.msra.mxu0 0.0
    %906 = vmatprep.subr.mxu0 0.0
    %907 = vmatpush1.xpose.msra.mxu0 0.0
    %908 = vmatprep.subr.mxu0 0.0
    %909 = vmatpush1.xpose.msra.mxu0 0.0
    %910 = vmatprep.subr.mxu0 0.0
    %911 = vmatpush1.xpose.msra.mxu0 0.0
    %912 = vmatprep.subr.mxu0 0.0
    %913 = vmatpush1.xpose.msra.mxu0 0.0
    %914 = vmatprep.subr.mxu0 0.0
    %915 = vmatpush1.xpose.msra.mxu0 0.0
    %916 = vmatprep.subr.mxu0 0.0
    %917 = vmatpush1.xpose.msra.mxu0 0.0
    %918 = vmatprep.subr.mxu0 0.0
    %919 = vmatpush1.xpose.msra.mxu0 0.0
    %920 = vmatprep.subr.mxu0 0.0
    %921 = vmatpush1.xpose.msra.mxu0 0.0
    %922 = vmatprep.subr.mxu0 0.0
    %923 = vmatpush1.xpose.msra.mxu0 0.0
    %924 = vmatprep.subr.mxu0 0.0
    %925 = vmatpush1.xpose.msra.mxu0 0.0
    %926 = vmatprep.subr.mxu0 0.0
    %927 = vmatpush1.xpose.msra.mxu0 0.0
    %928 = vmatprep.subr.mxu0 0.0
    %929 = vmatpush1.xpose.msra.mxu0 0.0
    %930 = vmatprep.mubr.f32.mxu0 0.0
    %931 = vmatmul.mubr.f32.gmra.mrb[0].mxu0 %v842
    %v932 = vpop.f32.mrb[0].mxu0
    %v933 = vadd.f32 %v864, %v932
    %v934 = vpop.f32.mrb[0].mxu0
    %935 = vdwg.mxu0
    %v936 = vadd.f32 %v933, %v810
    %937 = vst [vmem:[#allocation2] sm:$0xff] %v936
    // Predicated region
    $region50: #{block_forward.1} parent=1 // pred_check
      _
    $region51: #{block_forward.1} parent=1 // pred_check_branch
      %939 = sbr.rel (0) target = $region53
    $region52: #{block_forward.1} parent=1 // pred_region
      %s941 = ssub.s32 128, 128
      %942 = vsyncadd [#allocation3], %s941
      %s944 = sshll.u32 [#allocation2], 4
      %s945 = int_to_ptr.vmem [resolvable:$true] %s944
      %947 = dma.vmem_to_hbm [thread:$0]  %s945, 128, %s12, [#allocation3]
    $region53: #{block_forward.1} parent=1 // pred_fallthru
      _
    // Predicated region
    $region54: #{block_forward.1} parent=1 // pred_check
      _
    $region55: #{block_forward.1} parent=1 // pred_check_branch
      %949 = sbr.rel (0) target = $region57
    $region56: #{block_forward.1} parent=1 // pred_region
      %s951 = ssub.s32 128, 128
      %952 = vsyncadd [#allocation5], %s951
      %s954 = sshll.u32 [#allocation4], 4
      %s955 = int_to_ptr.vmem [resolvable:$true] %s954
      %957 = dma.vmem_to_hbm [thread:$0]  %s955, 128, %s13, [#allocation5]
    $region57: #{block_forward.1} parent=1 // pred_fallthru
      _
    // Predicated region
    $region58: #{block_forward.1} parent=1 // pred_check
      _
    $region59: #{block_forward.1} parent=1 // pred_check_branch
      %959 = sbr.rel (0) target = $region61
    $region60: #{block_forward.1} parent=1 // pred_region
      %960 = dma.done [#allocation3], 128
    $region61: #{block_forward.1} parent=1 // pred_fallthru
      _
    // Predicated region
    $region62: #{block_forward.1} parent=1 // pred_check
      _
    $region63: #{block_forward.1} parent=1 // pred_check_branch
      %962 = sbr.rel (0) target = $region65
    $region64: #{block_forward.1} parent=1 // pred_region
      %963 = dma.done [#allocation5], 128
    $region65: #{block_forward.1} parent=1 // pred_fallthru
      _
    %964 = vsyncpa [#allocation3], 1
    %965 = vsyncpa [#allocation5], 1

</llo_original>
